<compile_context>
chip_gen: v5e
topology: v5e:2x2
jax: 0.10.0
libtpu: 0.0.40
codegen_flags: <defaults>
</compile_context>

<pallas_src>
import functools

import jax
import jax.numpy as jnp
import numpy as np
from jax import lax
from jax.experimental import pallas as pl
from jax.experimental.pallas import tpu as pltpu

LN_EPS = 1e-5
RMS_EPS = 1e-5

# Weights with constant index maps bigger than this are single-buffered.
_SINGLE_BUFFER_BYTES = 4 * 1024 * 1024


# ----------------------------------------------------------------------------
# small helpers
# ----------------------------------------------------------------------------
def _layernorm(h, eps):
    mean = jnp.mean(h, axis=-1, keepdims=True)
    var = jnp.mean((h - mean) ** 2, axis=-1, keepdims=True)
    return (h - mean) * lax.rsqrt(var + eps)


def _rmsnorm(h, w, eps):
    ms = jnp.mean(h * h, axis=-1, keepdims=True)
    return h * lax.rsqrt(ms + eps) * w


def _pick_tile(n, target, multiple=1):
    """Largest divisor of n that is <= target and a multiple of `multiple`.

    Falls back to n itself (a full-extent block is always a legal block size),
    which avoids the (8, 128) BlockSpec constraint for awkward shapes.
    """
    target = max(1, min(n, int(target)))
    for t in range(target, 0, -1):
        if n % t == 0 and t % multiple == 0:
            return t
    return n


def _vmem_info():
    """(physical VMEM capacity, scoped-VMEM limit to request)."""
    try:
        cap = pltpu.get_tpu_info().vmem_capacity_bytes
    except Exception:
        cap = 64 * 1024 * 1024
    # Capacity minus ~8 MiB headroom (review item: don't over-constrain the
    # pipeline), capped at 128 MiB.
    limit = int(min(cap - 8 * 1024 * 1024, 128 * 1024 * 1024))
    return cap, limit


def _const_weight_spec(block_shape, index_map, nbytes):
    """BlockSpec for a weight block with a constant index map (DMA'd once).

    Large blocks are single-buffered (pl.Buffered(1)) to halve their VMEM
    footprint -- at D=4096 this is the difference between fitting and blowing
    v7x's 64 MiB VMEM.  Small blocks keep the default buffering.
    """
    if nbytes >= _SINGLE_BUFFER_BYTES:
        try:
            return pl.BlockSpec(block_shape, index_map,
                                pipeline_mode=pl.Buffered(1))
        except (TypeError, AttributeError):
            pass  # older Pallas without pipeline_mode: fall back silently
    return pl.BlockSpec(block_shape, index_map)


# ----------------------------------------------------------------------------
# kernel 1: LayerNorm + fused QKV projection
# ----------------------------------------------------------------------------
def _ln_qkv_kernel(x_ref, wqkv_ref, qkv_ref):
    # LayerNorm in f32 (recomputed per output-column tile; it is trivial VPU
    # work next to the (tr, D) x (D, tn) matmul), MXU operands in compute dtype.
    h1 = _layernorm(x_ref[...].astype(jnp.float32), LN_EPS)
    h1 = h1.astype(wqkv_ref.dtype)
    qkv_ref[...] = jnp.dot(
        h1, wqkv_ref[...], preferred_element_type=jnp.float32
    ).astype(qkv_ref.dtype)


# ----------------------------------------------------------------------------
# kernel 2: QK-RMSNorm + flash attention (online softmax)
# ----------------------------------------------------------------------------
def _flash_attn_kernel(qns_ref, kn_ref, q_ref, k_ref, v_ref, o_ref,
                       qn_sc, m_sc, l_sc, acc_sc):
    ki = pl.program_id(3)

    @pl.when(ki == 0)
    def _():
        m_sc[...] = jnp.full_like(m_sc, -jnp.inf)
        l_sc[...] = jnp.zeros_like(l_sc)
        acc_sc[...] = jnp.zeros_like(acc_sc)
        # q RMSNorm depends only on (b, h, qi): hoist it out of the kv loop.
        # 1/sqrt(head_dim) is pre-folded into the q-norm weight, so no extra
        # scaling of the scores is needed.
        qn_sc[...] = _rmsnorm(q_ref[...].astype(jnp.float32), qns_ref[...],
                              RMS_EPS).astype(qn_sc.dtype)

    # Per-head RMSNorm of k in f32.
    k = _rmsnorm(k_ref[...].astype(jnp.float32), kn_ref[...], RMS_EPS)
    k = k.astype(v_ref.dtype)

    # (tq, tk) scores: contract last dims -> no explicit K transpose.
    s = lax.dot_general(qn_sc[...], k, (((1,), (1,)), ((), ())),
                        preferred_element_type=jnp.float32)

    m_prev = m_sc[...]
    m_new = jnp.maximum(m_prev, jnp.max(s, axis=-1, keepdims=True))
    alpha = jnp.exp(m_prev - m_new)
    p = jnp.exp(s - m_new)
    l_sc[...] = alpha * l_sc[...] + jnp.sum(p, axis=-1, keepdims=True)
    acc_sc[...] = alpha * acc_sc[...] + jnp.dot(
        p.astype(v_ref.dtype), v_ref[...], preferred_element_type=jnp.float32)
    m_sc[...] = m_new

    @pl.when(ki == pl.num_programs(3) - 1)
    def _():
        o_ref[...] = (
            acc_sc[...] * pl.reciprocal(l_sc[...], approx=True)
        ).astype(o_ref.dtype)


# ----------------------------------------------------------------------------
# kernel 3: out-proj + residual + LayerNorm + MLP + residual
# ----------------------------------------------------------------------------
def _post_block_kernel(x_ref, a_ref, wfc_ref, w1_ref, w2_ref, o_ref,
                       acc_sc, h2_sc, *, approx_gelu):
    hi = pl.program_id(1)

    @pl.when(hi == 0)
    def _():
        x1 = x_ref[...].astype(jnp.float32) + jnp.dot(
            a_ref[...], wfc_ref[...], preferred_element_type=jnp.float32)
        acc_sc[...] = x1                                       # residual seed
        h2_sc[...] = _layernorm(x1, LN_EPS).astype(h2_sc.dtype)

    m = jnp.dot(h2_sc[...], w1_ref[...], preferred_element_type=jnp.float32)
    m = jax.nn.gelu(m, approximate=approx_gelu)                # exact by default
    acc_sc[...] += jnp.dot(m.astype(w2_ref.dtype), w2_ref[...],
                           preferred_element_type=jnp.float32)

    @pl.when(hi == pl.num_programs(1) - 1)
    def _():
        o_ref[...] = acc_sc[...].astype(o_ref.dtype)


# ----------------------------------------------------------------------------
# wrapper
# ----------------------------------------------------------------------------
def qk_norm_self_attention_block(x, params, head_dim, *,
                                 compute_dtype=jnp.bfloat16,
                                 row_tile=None,          # row tile over B*L
                                 attn_q_tile=512,        # attention q tile
                                 attn_kv_tile=512,       # attention kv tile
                                 qkv_col_tile=None,      # None = auto
                                 mlp_hidden_tile=None,   # None = auto
                                 approx_gelu=False):
    """x: (B, L, D) float32.  params: dict of weights (see init_params)."""
    B, L, D = x.shape
    assert D % head_dim == 0
    nh = D // head_dim
    H = params["w1"].shape[1]
    cdt = np.dtype(compute_dtype)
    itemsize = cdt.itemsize
    N = B * L

    cap, vmem_limit = _vmem_info()
    # Rough per-kernel budget for "keep the weight resident in VMEM".
    weight_budget = max(8 * 1024 * 1024, vmem_limit // 3)

    def cparams(sem):
        return pltpu.CompilerParams(dimension_semantics=sem,
                                    vmem_limit_bytes=vmem_limit)

    # ---- tile selection (generation-aware: smaller row tiles on small-VMEM
    # parts such as v7x, larger on v5e/v6e to amortize weight streaming) ------
    if row_tile is None:
        row_tile = 512 if cap >= 96 * 1024 * 1024 else 256
    tr = _pick_tile(N, row_tile, 8)             # kernels 1 & 3 row tile
    tq = _pick_tile(L, attn_q_tile, 8)          # flash attention q tile
    tk = _pick_tile(L, attn_kv_tile, 8)         # flash attention kv tile

    if qkv_col_tile is not None:
        tn = _pick_tile(3 * D, qkv_col_tile, 128)
    elif D * 3 * D * itemsize <= weight_budget:
        tn = 3 * D                              # wqkv fully resident
    else:                                       # tile 3D columns (v7x @ big D)
        tn = _pick_tile(3 * D, max(128, weight_budget // (2 * D * itemsize)), 128)

    if mlp_hidden_tile is not None:
        th = _pick_tile(H, mlp_hidden_tile, 128)
    elif 2 * D * H * itemsize <= weight_budget:
        th = H                                  # w1/w2 fully resident
    else:
        th = _pick_tile(H, max(128, weight_budget // (4 * D * itemsize)), 128)

    nr, ncol = N // tr, (3 * D) // tn
    nq, nk, nH = L // tq, L // tk, H // th

    # MXU operands in compute_dtype; norm weights stay f32.
    wqkv = params["wqkv"].astype(cdt)
    wfc = params["wfc"].astype(cdt)
    w1 = params["w1"].astype(cdt)
    w2 = params["w2"].astype(cdt)
    qn_scaled = (params["qn_w"] * (1.0 / np.sqrt(head_dim))).astype(jnp.float32)
    kn_w = params["kn_w"].astype(jnp.float32)

    x2d = x.reshape(N, D)      # free reshape: flatten batch*seq

    # ---- kernel 1: LayerNorm + QKV projection -------------------------------
    if ncol == 1:
        wqkv_spec = _const_weight_spec((D, tn), lambda i, j: (0, 0),
                                       D * tn * itemsize)
    else:
        wqkv_spec = pl.BlockSpec((D, tn), lambda i, j: (0, j))

    qkv2d = pl.pallas_call(
        _ln_qkv_kernel,
        out_shape=jax.ShapeDtypeStruct((N, 3 * D), cdt),
        grid_spec=pltpu.PrefetchScalarGridSpec(
            num_scalar_prefetch=0,
            grid=(nr, ncol),
            in_specs=[
                pl.BlockSpec((tr, D), lambda i, j: (i, 0)),
                wqkv_spec,
            ],
            out_specs=pl.BlockSpec((tr, tn), lambda i, j: (i, j)),
        ),
        compiler_params=cparams(("parallel", "parallel")),
    )(x2d, wqkv)

    qkv = qkv2d.reshape(B, L, 3 * D)   # free reshape

    # ---- kernel 2: QK-RMSNorm + flash attention ------------------------------
    flash_scratch = [
        pltpu.VMEM((tq, head_dim), cdt),          # hoisted normalized q
        pltpu.VMEM((tq, 1), jnp.float32),         # running max
        pltpu.VMEM((tq, 1), jnp.float32),         # running denom
        pltpu.VMEM((tq, head_dim), jnp.float32),  # output accumulator
    ]
    norm_specs = [
        pl.BlockSpec((1, head_dim), lambda b, h, qi, ki: (0, 0)),
        pl.BlockSpec((1, head_dim), lambda b, h, qi, ki: (0, 0)),
    ]
    attn_sem = ("parallel", "parallel", "parallel", "arbitrary")

    if head_dim % 128 == 0:
        # Transpose-free path: per-head reads straight from (B, L, 3D) and
        # per-head writes straight into (B, L, D).  Saves two full HBM round
        # trips of the activations (q/k/v are at columns h, nh+h, 2nh+h).
        attn = pl.pallas_call(
            _flash_attn_kernel,
            out_shape=jax.ShapeDtypeStruct((B, L, D), cdt),
            grid_spec=pltpu.PrefetchScalarGridSpec(
                num_scalar_prefetch=0,
                grid=(B, nh, nq, nk),
                in_specs=norm_specs + [
                    pl.BlockSpec((None, tq, head_dim),
                                 lambda b, h, qi, ki: (b, qi, h)),
                    pl.BlockSpec((None, tk, head_dim),
                                 lambda b, h, qi, ki: (b, ki, nh + h)),
                    pl.BlockSpec((None, tk, head_dim),
                                 lambda b, h, qi, ki: (b, ki, 2 * nh + h)),
                ],
                out_specs=pl.BlockSpec((None, tq, head_dim),
                                       lambda b, h, qi, ki: (b, qi, h)),
                scratch_shapes=flash_scratch,
            ),
            compiler_params=cparams(attn_sem),
        )(qn_scaled, kn_w, qkv, qkv, qkv)
        attn2d = attn.reshape(N, D)
    else:
        # Fallback (head_dim not a multiple of 128, e.g. tiny test shapes):
        # head-major layout via XLA transposes.
        qkv4 = qkv.reshape(B, L, 3, nh, head_dim)
        qkv4 = jnp.transpose(qkv4, (2, 0, 3, 1, 4))   # (3, B, nh, L, dh)
        q, k, v = qkv4[0], qkv4[1], qkv4[2]
        o = pl.pallas_call(
            _flash_attn_kernel,
            out_shape=jax.ShapeDtypeStruct((B, nh, L, head_dim), cdt),
            grid_spec=pltpu.PrefetchScalarGridSpec(
                num_scalar_prefetch=0,
                grid=(B, nh, nq, nk),
                in_specs=norm_specs + [
                    pl.BlockSpec((None, None, tq, head_dim),
                                 lambda b, h, qi, ki: (b, h, qi, 0)),
                    pl.BlockSpec((None, None, tk, head_dim),
                                 lambda b, h, qi, ki: (b, h, ki, 0)),
                    pl.BlockSpec((None, None, tk, head_dim),
                                 lambda b, h, qi, ki: (b, h, ki, 0)),
                ],
                out_specs=pl.BlockSpec((None, None, tq, head_dim),
                                       lambda b, h, qi, ki: (b, h, qi, 0)),
                scratch_shapes=flash_scratch,
            ),
            compiler_params=cparams(attn_sem),
        )(qn_scaled, kn_w, q, k, v)
        attn2d = jnp.transpose(o, (0, 2, 1, 3)).reshape(N, D)

    # ---- kernel 3: out-proj + residual + LayerNorm + MLP + residual ----------
    wfc_spec = _const_weight_spec((D, D), lambda i, j: (0, 0), D * D * itemsize)
    if nH == 1:
        w1_spec = _const_weight_spec((D, th), lambda i, j: (0, 0),
                                     D * th * itemsize)
        w2_spec = _const_weight_spec((th, D), lambda i, j: (0, 0),
                                     th * D * itemsize)
    else:
        w1_spec = pl.BlockSpec((D, th), lambda i, j: (0, j))
        w2_spec = pl.BlockSpec((th, D), lambda i, j: (j, 0))

    out2d = pl.pallas_call(
        functools.partial(_post_block_kernel, approx_gelu=approx_gelu),
        out_shape=jax.ShapeDtypeStruct((N, D), x.dtype),
        grid_spec=pltpu.PrefetchScalarGridSpec(
            num_scalar_prefetch=0,
            grid=(nr, nH),
            in_specs=[
                pl.BlockSpec((tr, D), lambda i, j: (i, 0)),   # x (residual)
                pl.BlockSpec((tr, D), lambda i, j: (i, 0)),   # attention out
                wfc_spec,
                w1_spec,
                w2_spec,
            ],
            out_specs=pl.BlockSpec((tr, D), lambda i, j: (i, 0)),
            scratch_shapes=[
                pltpu.VMEM((tr, D), jnp.float32),   # x1 + MLP accumulator
                pltpu.VMEM((tr, D), cdt),           # normed x1 (MXU operand)
            ],
        ),
        compiler_params=cparams(("parallel", "arbitrary")),
    )(x2d, attn2d, wfc, w1, w2)

    return out2d.reshape(B, L, D)


# ----------------------------------------------------------------------------
# params / reference
# ----------------------------------------------------------------------------
def init_params(key, dim, head_dim, mlp_ratio=4):
    hidden = int(dim * mlp_ratio)
    k1, k2, k3, k4 = jax.random.split(key, 4)
    s = 0.02
    return {
        "wqkv": jax.random.normal(k1, (dim, 3 * dim), jnp.float32) * s,
        "qn_w": jnp.ones((1, head_dim), jnp.float32),   # RMSNorm init = ones
        "kn_w": jnp.ones((1, head_dim), jnp.float32),
        "wfc": jax.random.normal(k2, (dim, dim), jnp.float32) * s,
        "w1": jax.random.normal(k3, (dim, hidden), jnp.float32) * s,
        "w2": jax.random.normal(k4, (hidden, dim), jnp.float32) * s,
    }


def reference_block(x, params, head_dim):
    """Pure-JAX f32 reference for correctness checking."""
    with jax.default_matmul_precision("float32"):
        B, L, D = x.shape
        nh = D // head_dim
        scale = 1.0 / float(np.sqrt(head_dim))

        h1 = _layernorm(x, LN_EPS)
        qkv = h1 @ params["wqkv"]
        q, k, v = jnp.split(qkv, 3, axis=-1)
        q = q.reshape(B, L, nh, head_dim)
        k = k.reshape(B, L, nh, head_dim)
        v = v.reshape(B, L, nh, head_dim)
        q = _rmsnorm(q, params["qn_w"][0], RMS_EPS)
        k = _rmsnorm(k, params["kn_w"][0], RMS_EPS)
        s = jnp.einsum("blhd,bmhd->bhlm", q, k) * scale
        p = jax.nn.softmax(s, axis=-1)
        o = jnp.einsum("bhlm,bmhd->blhd", p, v).reshape(B, L, D)
        x1 = x + o @ params["wfc"]
        h2 = _layernorm(x1, LN_EPS)
        m = jax.nn.gelu(h2 @ params["w1"], approximate=False) @ params["w2"]
        return x1 + m


if __name__ == "__main__":
    key = jax.random.PRNGKey(0)

    # ---- case 1: tiny shapes (num_heads=4, mlp hidden=256), f32 MXU path.
    # Small explicit tiles so multi-tile / online-softmax / accumulator paths
    # are exercised (4 row tiles, 2x2 attention tiles, 2 MLP hidden tiles).
    B, L, D, head_dim = 2, 16, 64, 16
    kx, kp, key = jax.random.split(key, 3)
    x = jax.random.normal(kx, (B, L, D), jnp.float32)
    params = init_params(kp, D, head_dim)
    ref = reference_block(x, params, head_dim)
    out_f32 = qk_norm_self_attention_block(
        x, params, head_dim, compute_dtype=jnp.float32,
        row_tile=8, attn_q_tile=8, attn_kv_tile=8, mlp_hidden_tile=128)
    out_f32 = jax.block_until_ready(out_f32)
    np.testing.assert_allclose(np.asarray(out_f32), np.asarray(ref),
                               rtol=2e-3, atol=2e-3)

    # ---- case 2: same shapes, bf16 MXU path with default (auto) tiling.
    out_bf16 = qk_norm_self_attention_block(x, params, head_dim,
                                            compute_dtype=jnp.bfloat16)
    out_bf16 = jax.block_until_ready(out_bf16)
    np.testing.assert_allclose(np.asarray(out_bf16), np.asarray(ref),
                               rtol=5e-2, atol=5e-2)

    # ---- case 3: head_dim=128 so the transpose-free per-head BlockSpec path
    # (direct (B,L,3D) reads, direct (B,L,D) writes) is exercised, with
    # multiple q/kv/row/hidden tiles.
    B, L, D, head_dim = 2, 128, 256, 128
    kx, kp, key = jax.random.split(key, 3)
    x = jax.random.normal(kx, (B, L, D), jnp.float32)
    params = init_params(kp, D, head_dim)
    ref = reference_block(x, params, head_dim)
    out = qk_norm_self_attention_block(
        x, params, head_dim, compute_dtype=jnp.float32,
        row_tile=64, attn_q_tile=64, attn_kv_tile=64, mlp_hidden_tile=512)
    out = jax.block_until_ready(out)
    np.testing.assert_allclose(np.asarray(out), np.asarray(ref),
                               rtol=3e-3, atol=3e-3)

    print("KERNEL_OK")
</pallas_src>

<mosaic_0001>
module attributes {stable_mosaic.version = 11 : i64} {
  func.func @_ln_qkv_kernel(%arg0: i32, %arg1: i32, %arg2: memref<8x64xf32, #tpu.memory_space<vmem>>, %arg3: memref<64x192xf32, #tpu.memory_space<vmem>>, %arg4: memref<8x192xf32, #tpu.memory_space<vmem>>) attributes {dimension_semantics = [#tpu.dimension_semantics<parallel>, #tpu.dimension_semantics<parallel>], iteration_bounds = array<i64: 4, 1>, scalar_prefetch = 0 : i64, scratch_operands = 0 : i64, tpu.core_type = #tpu.core_type<tc>, window_params = [{transform_indices = @transform_0, window_bounds = array<i64: 8, 64>}, {pipeline_mode = #tpu.pipeline_mode<synchronous>, transform_indices = @transform_1, window_bounds = array<i64: 64, 192>}, {transform_indices = @transform_2, window_bounds = array<i64: 8, 192>}]} {
    %c0 = arith.constant 0 : index
    %c0_0 = arith.constant 0 : index
    %0 = vector.load %arg2[%c0, %c0_0] : memref<8x64xf32, #tpu.memory_space<vmem>>, vector<8x64xf32>
    %cst = arith.constant dense<0.000000e+00> : vector<8xf32>
    %1 = vector.multi_reduction <add>, %0, %cst [1] : vector<8x64xf32> to vector<8xf32>
    %2 = vector.shape_cast %1 : vector<8xf32> to vector<8x1xf32>
    %cst_1 = arith.constant 6.400000e+01 : f32
    %3 = vector.broadcast %cst_1 : f32 to vector<8x1xf32>
    %4 = arith.divf %2, %3 : vector<8x1xf32>
    %5 = vector.broadcast %4 : vector<8x1xf32> to vector<8x64xf32>
    %6 = arith.subf %0, %5 : vector<8x64xf32>
    %7 = arith.mulf %6, %6 : vector<8x64xf32>
    %cst_2 = arith.constant dense<0.000000e+00> : vector<8xf32>
    %8 = vector.multi_reduction <add>, %7, %cst_2 [1] : vector<8x64xf32> to vector<8xf32>
    %9 = vector.shape_cast %8 : vector<8xf32> to vector<8x1xf32>
    %cst_3 = arith.constant 6.400000e+01 : f32
    %10 = vector.broadcast %cst_3 : f32 to vector<8x1xf32>
    %11 = arith.divf %9, %10 : vector<8x1xf32>
    %12 = vector.broadcast %4 : vector<8x1xf32> to vector<8x64xf32>
    %13 = arith.subf %0, %12 : vector<8x64xf32>
    %cst_4 = arith.constant 9.99999974E-6 : f32
    %14 = vector.broadcast %cst_4 : f32 to vector<8x1xf32>
    %15 = arith.addf %11, %14 : vector<8x1xf32>
    %16 = math.rsqrt %15 : vector<8x1xf32>
    %17 = vector.broadcast %16 : vector<8x1xf32> to vector<8x64xf32>
    %18 = arith.mulf %13, %17 : vector<8x64xf32>
    %c0_5 = arith.constant 0 : index
    %c0_6 = arith.constant 0 : index
    %19 = vector.load %arg3[%c0_5, %c0_6] : memref<64x192xf32, #tpu.memory_space<vmem>>, vector<64x192xf32>
    %cst_7 = arith.constant dense<0.000000e+00> : vector<8x192xf32>
    %20 = tpu.matmul %18, %19, %cst_7 {dimension_numbers = #tpu.dot_dimension_numbers<[1], [0], [0], [1], [0, 0, 1, 1], [], []>} : vector<8x64xf32>, vector<64x192xf32>, vector<8x192xf32> -> vector<8x192xf32>
    %c0_8 = arith.constant 0 : index
    %c0_9 = arith.constant 0 : index
    %21 = vector.load %arg4[%c0_8, %c0_9] : memref<8x192xf32, #tpu.memory_space<vmem>>, vector<8x192xf32>
    tpu.vector_store %arg4[%c0_8, %c0_9], %20 {strides = array<i32>} : memref<8x192xf32, #tpu.memory_space<vmem>>, vector<8x192xf32>,
    return
  }
  func.func @transform_0(%arg0: i32, %arg1: i32) -> (i32, i32) {
    %c0_i32 = arith.constant 0 : i32
    %c0_i32_0 = arith.constant 0 : i32
    return %arg0, %c0_i32 : i32, i32
  }
  func.func @transform_1(%arg0: i32, %arg1: i32) -> (i32, i32) {
    %c0_i32 = arith.constant 0 : i32
    %c0_i32_0 = arith.constant 0 : i32
    %c0_i32_1 = arith.constant 0 : i32
    return %c0_i32, %c0_i32_0 : i32, i32
  }
  func.func @transform_2(%arg0: i32, %arg1: i32) -> (i32, i32) {
    %c0_i32 = arith.constant 0 : i32
    return %arg0, %arg1 : i32, i32
  }
}

</mosaic_0001>

<llo_original>
// kernel: tpu_custom_call.1
$region0: #{tpu_custom_call.1}
  #allocation0 [shape = 'u32[]', space=smem, size = 0x4, offset = 0x4, fixed_abs, tag = 'smem constant byte address 0x4 - core index']
  #allocation1 [shape = 'u32[72,128]{1,0:T(1,128)}', space=vmem, size = 0x9000, scoped, tag = 'internal scratch']
  %s0 = inlined_call_operand.hbm [shape: f32[32,64], index: 0, kind: input, shape index: {}]
  %s1 = inlined_call_operand.hbm [shape: f32[64,192], index: 1, kind: input, shape index: {}]
  %s2 = inlined_call_operand.hbm [shape: f32[32,192], index: 2, kind: output, shape index: {}]
  %s3 = sld [smem:[#allocation0]]
  $region49: #{tpu_custom_call.1} parent=0
    _
  %s5 = ssub.s32 1, %s3
  %s6 = scalar_select 0, %s5, %s3
  $region1: #{tpu_custom_call.1} parent=0
    #allocation2 [shape = 'u8[8192]{0}', space=vmem, size = 0x2000, scoped, tag = 'input window, operand 0']
    #allocation3 [shape = 's32[2]{0}', space=sflag, size = 0x8, scoped, tag = 'scoped memory for tpu_custom_call.1']
    #allocation4 [shape = 's32[2]{0}', space=sflag, size = 0x8, scoped, tag = 'scoped memory for tpu_custom_call.1']
    #allocation5 [shape = 'u8[65536]{0}', space=vmem, size = 0x10000, scoped, tag = 'input window, operand 1, single buffered']
    #allocation6 [shape = 's32[1]{0}', space=sflag, size = 0x4, scoped, tag = 'scoped memory for tpu_custom_call.1']
    #allocation7 [shape = 'u8[16384]{0}', space=vmem, size = 0x4000, scoped, tag = 'output window, operand 0']
    %7 = vsyncpa [#allocation3], 0
    %s8 = scalar_lea.sflag [#allocation3], 1
    %9 = vsyncpa %s8, 0
    %10 = vsyncpa [#allocation6], 0
    %11 = vsyncpa [#allocation4], 0
    %s12 = scalar_lea.sflag [#allocation4], 1
    %13 = vsyncpa %s12, 0
    loop: start=0, step=1, limit=6
    $region2: #{tpu_custom_call.1} parent=1 // loop_pre_header
      _
    $region3: #{tpu_custom_call.1} parent=1 // loop_header
      %s15 = sphi 0, %s19
      %p16 = scmp.ge.s32.totalorder %s15, 6
      %s22 = sphi 0, %s34
      %s23 = sphi 0, %s30
      %s24 = sphi 0, %s22
      %s25 = sphi 0, %s23
      %s26 = sphi 0, %s24
      %s27 = sphi 0, %s25
      %s37 = sphi 0, %s39
      %s40 = sphi 0, %s37
      %s41 = sphi 0, %s40
      %s57 = sphi 0, %s41
      %s61 = sphi 0, %s61
      %s63 = sphi 0, %s61
      %s64 = sphi 0, %s63
      %s78 = sphi 0, %s64
      %s86 = sphi 0, %s88
      %s89 = sphi 0, %s86
      %s90 = sphi 0, %s89
      %s106 = sphi 0, %s90
    $region4: #{tpu_custom_call.1} parent=1 // loop_header_branch
      %18 = sbr.rel (%p16) target = $region8
    $region5: #{tpu_custom_call.1} parent=1 // loop_body
      %s20 = ssub.s32 %s15, 1
      %s21 = ssub.s32 %s15, 2
      %s28 = sadd.s32 1, %s23
      %p29 = scmp.ge.s32.totalorder %s28, 1
      %s30 = scalar_select %p29, 0, %s28
      %s31 = sadd.s32 1, %s22
      %s32 = scalar_select %p29, %s31, %s22
      %p33 = scmp.ge.s32.totalorder %s32, 4
      %s34 = scalar_select %p33, 0, %s32
      %s35 = ssub.s32 %s22, %s34
      %p36 = scmp.eq.s32.totalorder %s35, 0
      %s38 = sadd.s32 %s37, 1
      %s39 = scalar_select %p36, %s37, %s38
      %p42 = pneg %p36
      %p43 = scmp.eq.s32.totalorder %s15, 3
      %p44 = por %p42, %p43
      %p45 = scmp.ne.s32.totalorder %s37, %s40
      %p46 = scmp.eq.s32.totalorder %s15, 0
      %p47 = por %p45, %p46
      %p48 = scmp.ne.s32.totalorder %s37, %s40
      %p49 = scmp.eq.s32.totalorder %s20, 3
      %p50 = por %p48, %p49
      %p51 = scmp.ne.s32.totalorder %s40, %s41
      %p52 = scmp.eq.s32.totalorder %s20, 0
      %p53 = por %p51, %p52
      %p54 = scmp.ne.s32.totalorder %s40, %s41
      %p55 = scmp.eq.s32.totalorder %s21, 3
      %p56 = por %p54, %p55
      %p58 = scmp.ne.s32.totalorder %s41, %s57
      %p59 = scmp.eq.s32.totalorder %s21, 0
      %p60 = por %p58, %p59
      %s62 = sadd.s32 %s61, 1
      %p65 = scmp.eq.s32.totalorder %s15, 3
      %p66 = scmp.ne.s32.totalorder %s61, %s63
      %p67 = scmp.eq.s32.totalorder %s15, 0
      %p68 = por %p66, %p67
      %p69 = scmp.ne.s32.totalorder %s61, %s63
      %p70 = scmp.eq.s32.totalorder %s20, 3
      %p71 = por %p69, %p70
      %p72 = scmp.ne.s32.totalorder %s63, %s64
      %p73 = scmp.eq.s32.totalorder %s20, 0
      %p74 = por %p72, %p73
      %p75 = scmp.ne.s32.totalorder %s63, %s64
      %p76 = scmp.eq.s32.totalorder %s21, 3
      %p77 = por %p75, %p76
      %p79 = scmp.ne.s32.totalorder %s64, %s78
      %p80 = scmp.eq.s32.totalorder %s21, 0
      %p81 = por %p79, %p80
      %s82 = ssub.s32 %s22, %s34
      %s83 = ssub.s32 %s23, %s30
      %s84 = sor.u32 %s82, %s83
      %p85 = scmp.eq.s32.totalorder %s84, 0
      %s87 = sadd.s32 %s86, 1
      %s88 = scalar_select %p85, %s86, %s87
      %p91 = pneg %p85
      %p92 = scmp.eq.s32.totalorder %s15, 3
      %p93 = por %p91, %p92
      %p94 = scmp.ne.s32.totalorder %s86, %s89
      %p95 = scmp.eq.s32.totalorder %s15, 0
      %p96 = por %p94, %p95
      %p97 = scmp.ne.s32.totalorder %s86, %s89
      %p98 = scmp.eq.s32.totalorder %s20, 3
      %p99 = por %p97, %p98
      %p100 = scmp.ne.s32.totalorder %s89, %s90
      %p101 = scmp.eq.s32.totalorder %s20, 0
      %p102 = por %p100, %p101
      %p103 = scmp.ne.s32.totalorder %s89, %s90
      %p104 = scmp.eq.s32.totalorder %s21, 3
      %p105 = por %p103, %p104
      %p107 = scmp.ne.s32.totalorder %s90, %s106
      %p108 = scmp.eq.s32.totalorder %s21, 0
      %p109 = por %p107, %p108
      %p110 = scmp.le.s32.totalorder 1, %s15
      %p111 = scmp.lt.s32.totalorder %s15, 5
      %p112 = pnand %p110, %p111
      %p113 = pneg %p112
      // Predicated region
      $region9: #{tpu_custom_call.1} parent=5 // pred_check
        _
      $region10: #{tpu_custom_call.1} parent=5 // pred_check_branch
        %115 = sbr.rel (%p112) target = $region12
      $region11: #{tpu_custom_call.1} parent=5 // pred_region
        %s116 = ssub.s32 %s15, 1
        // Predicated region
        $region13: #{tpu_custom_call.1} parent=11 // pred_check
          %p117 = pneg %p74
        $region14: #{tpu_custom_call.1} parent=11 // pred_check_branch
          %119 = sbr.rel (%p117) target = $region16
        $region15: #{tpu_custom_call.1} parent=11 // pred_region
          %121 = vsyncadd [#allocation6], 0
          %s122 = sshll.u32 %s1, 4
          %s123 = int_to_ptr.hbm [resolvable:$true] %s122
          %s124 = sshll.u32 [#allocation5], 4
          %s125 = int_to_ptr.vmem [resolvable:$true] %s124
          %130 = dma.hbm_to_vmem [thread:$0]  %s123, 2048, %s125, [#allocation6], 256, 256, 16
        $region16: #{tpu_custom_call.1} parent=11 // pred_fallthru
          _
      $region12: #{tpu_custom_call.1} parent=5 // pred_fallthru
        _
      %p131 = scmp.lt.s32.totalorder %s15, 4
      // Predicated region
      $region17: #{tpu_custom_call.1} parent=5 // pred_check
        %p132 = pneg %p131
      $region18: #{tpu_custom_call.1} parent=5 // pred_check_branch
        %134 = sbr.rel (%p132) target = $region20
      $region19: #{tpu_custom_call.1} parent=5 // pred_region
        // Predicated region
        $region21: #{tpu_custom_call.1} parent=19 // pred_check
          %p135 = pneg %p47
        $region22: #{tpu_custom_call.1} parent=19 // pred_check_branch
          %137 = sbr.rel (%p135) target = $region24
        $region23: #{tpu_custom_call.1} parent=19 // pred_region
          %s138 = sand.u32 %s37, 1
          %s139 = scalar_lea.sflag [#allocation3], %s138
          %s140 = sand.u32 %s37, 1
          %s141 = smul.addr %s140, 8
          %s142 = scalar_lea.vmem [#allocation2], %s141
          %144 = vsyncadd %s139, 0
          %s145 = smul.addr %s22, 8
          %s146 = scalar_lea.hbm %s0, %s145
          %s148 = sshll.u32 %s146, 4
          %s149 = int_to_ptr.hbm [resolvable:$true] %s148
          %s150 = sshll.u32 %s142, 4
          %s151 = int_to_ptr.vmem [resolvable:$true] %s150
          %153 = dma.hbm_to_vmem [thread:$0]  %s149, 128, %s151, %s139
        $region24: #{tpu_custom_call.1} parent=19 // pred_fallthru
          _
      $region20: #{tpu_custom_call.1} parent=5 // pred_fallthru
        _
      %p154 = scmp.le.s32.totalorder 1, %s15
      %p155 = scmp.lt.s32.totalorder %s15, 5
      %p156 = pnand %p154, %p155
      %p157 = pneg %p156
      // Predicated region
      $region25: #{tpu_custom_call.1} parent=5 // pred_check
        _
      $region26: #{tpu_custom_call.1} parent=5 // pred_check_branch
        %159 = sbr.rel (%p156) target = $region28
      $region27: #{tpu_custom_call.1} parent=5 // pred_region
        %s160 = ssub.s32 %s15, 1
        %s161 = sand.u32 %s40, 1
        %s162 = scalar_lea.sflag [#allocation3], %s161
        %s163 = sand.u32 %s40, 1
        %s164 = smul.addr %s163, 8
        %s165 = scalar_lea.vmem [#allocation2], %s164
        // Predicated region
        $region29: #{tpu_custom_call.1} parent=27 // pred_check
          %p166 = pneg %p53
        $region30: #{tpu_custom_call.1} parent=27 // pred_check_branch
          %168 = sbr.rel (%p166) target = $region32
        $region31: #{tpu_custom_call.1} parent=27 // pred_region
          %170 = dma.done %s162, 128
        $region32: #{tpu_custom_call.1} parent=27 // pred_fallthru
          _
        // Predicated region
        $region33: #{tpu_custom_call.1} parent=27 // pred_check
          %p171 = pneg %p74
        $region34: #{tpu_custom_call.1} parent=27 // pred_check_branch
          %173 = sbr.rel (%p171) target = $region36
        $region35: #{tpu_custom_call.1} parent=27 // pred_region
          %175 = dma.done [#allocation6], 2048
        $region36: #{tpu_custom_call.1} parent=27 // pred_fallthru
          _
        %s176 = sand.u32 %s40, 1
        %s177 = scalar_lea.sflag [#allocation3], %s176
        %s178 = sand.u32 %s40, 1
        %s179 = smul.addr %s178, 8
        %s180 = scalar_lea.vmem [#allocation2], %s179
        %p181 = pneg %p53
        %p182 = pneg %p50
        %p183 = pneg %p74
        %p184 = pneg %p71
        %p185 = pneg %p102
        %p186 = pneg %p99
        %s187 = sand.u32 %s89, 1
        %s188 = scalar_lea.sflag [#allocation4], %s187
        %s189 = sand.u32 %s89, 1
        %s190 = smul.addr %s189, 16
        %s191 = scalar_lea.vmem [#allocation7], %s190
        %s192 = smul.u32 2, %s25
        %v193 = vld [vmem:[%s165] sm:$0xff]
        %vm194 = vcmask 523264
        %v195 = vsel %vm194, %v193, 0.0
        %196 = vadd.xlane.f32.xlu0 %v195
        %v197 = vpop.xlane.xlu0 %196
        %v198 = vrcp.pop 64.0
        %v199 = vmul.f32 64.0, %v198
        %v200 = vsub.f32 1.0, %v199
        %v201 = vmul.f32 %v198, %v200
        %v202 = vadd.f32 %v198, %v201
        %vm203 = vweird.f32 %v198
        %v204 = vsel %vm203, %v198, %v202
        %v205 = vmul.f32 %v197, %v204
        %v206 = vsub.f32 %v193, %v205
        %v207 = vmul.f32 %v206, %v206
        %v208 = vsel %vm194, %v207, 0.0
        %209 = vadd.xlane.f32.xlu0 %v208
        %v210 = vpop.xlane.xlu0 %209
        %v211 = vmul.f32 %v210, %v204
        %v212 = vadd.f32 %v211, 1e-05
        %v213 = vrsqrt.pop %v212
        %v214 = vmul.f32 %v213, %v212
        %v215 = vmul.f32 %v214, %v213
        %v216 = vmul.f32 0.5, %v215
        %v217 = vsub.f32 1.5, %v216
        %v218 = vmul.f32 %v213, %v217
        %vm219 = vweird.f32 %v212
        %vm220 = vweird.f32 %v213
        %vm221 = vmor %vm219, %vm220
        %v222 = vsel %vm221, %v213, %v218
        %v223 = vmul.f32 %v206, %v222
        %v224 = vld [vmem:[#allocation5] sm:$0xff]
        %v225 = vld [vmem:[#allocation5 + $0x8] sm:$0xff]
        %v226 = vld [vmem:[#allocation5 + $0x10] sm:$0xff]
        %v227 = vld [vmem:[#allocation5 + $0x18] sm:$0xff]
        %v228 = vld [vmem:[#allocation5 + $0x20] sm:$0xff]
        %v229 = vld [vmem:[#allocation5 + $0x28] sm:$0xff]
        %v230 = vld [vmem:[#allocation5 + $0x30] sm:$0xff]
        %v231 = vld [vmem:[#allocation5 + $0x38] sm:$0xff]
        %v232 = vld [vmem:[#allocation5 + $0x40] sm:$0xff]
        %v233 = vld [vmem:[#allocation5 + $0x48] sm:$0xff]
        %v234 = vld [vmem:[#allocation5 + $0x50] sm:$0xff]
        %v235 = vld [vmem:[#allocation5 + $0x58] sm:$0xff]
        %v236 = vld [vmem:[#allocation5 + $0x60] sm:$0xff]
        %v237 = vld [vmem:[#allocation5 + $0x68] sm:$0xff]
        %v238 = vld [vmem:[#allocation5 + $0x70] sm:$0xff]
        %v239 = vld [vmem:[#allocation5 + $0x78] sm:$0xff]
        %v241 = vsel %vm194, %v223, 0
        %243 = vmatpush.msra.mxu0 0.0
        %244 = vmatpush.msra.mxu0 0.0
        %245 = vmatpush.msra.mxu0 0.0
        %246 = vmatpush.msra.mxu0 0.0
        %247 = vmatpush.msra.mxu0 0.0
        %248 = vmatpush.msra.mxu0 0.0
        %249 = vmatpush.msra.mxu0 0.0
        %250 = vmatpush.msra.mxu0 0.0
        %251 = vmatpush.msra.mxu0 %v238
        %252 = vmatpush.msra.mxu0 %v236
        %253 = vmatpush.msra.mxu0 %v234
        %254 = vmatpush.msra.mxu0 %v232
        %255 = vmatpush.msra.mxu0 %v230
        %256 = vmatpush.msra.mxu0 %v228
        %257 = vmatpush.msra.mxu0 %v226
        %258 = vmatpush.msra.mxu0 %v224
        %259 = vmatmul.f32.gmra.mxu0 %v241
        %v260 = vpop.f32.mrf.mxu0
        %v261 = vadd.f32 0.0, %v260
        %262 = vdwg.mxu0
        %263 = vmatpush.msra.mxu0 0.0
        %264 = vmatpush.msra.mxu0 0.0
        %265 = vmatpush.msra.mxu0 0.0
        %266 = vmatpush.msra.mxu0 0.0
        %267 = vmatpush.msra.mxu0 0.0
        %268 = vmatpush.msra.mxu0 0.0
        %269 = vmatpush.msra.mxu0 0.0
        %270 = vmatpush.msra.mxu0 0.0
        %271 = vmatpush.msra.mxu0 %v239
        %272 = vmatpush.msra.mxu0 %v237
        %273 = vmatpush.msra.mxu0 %v235
        %274 = vmatpush.msra.mxu0 %v233
        %275 = vmatpush.msra.mxu0 %v231
        %276 = vmatpush.msra.mxu0 %v229
        %277 = vmatpush.msra.mxu0 %v227
        %278 = vmatpush.msra.mxu0 %v225
        %279 = vmatmul.f32.gmra.mxu0 %v241
        %v280 = vpop.f32.mrf.mxu0
        %v281 = vadd.f32 0.0, %v280
        %282 = vdwg.mxu0
        %283 = vst [vmem:[%s191] sm:$0xff] %v261
        %284 = vst.msk [vmem:[%s191 + $0x8] sm:$0xff] %vm194, %v281
        %s285 = sand.u32 %s89, 1
        %s286 = scalar_lea.sflag [#allocation4], %s285
        %s287 = sand.u32 %s89, 1
        %s288 = smul.addr %s287, 16
        %s289 = scalar_lea.vmem [#allocation7], %s288
        // Predicated region
        $region37: #{tpu_custom_call.1} parent=27 // pred_check
          %p290 = pneg %p99
        $region38: #{tpu_custom_call.1} parent=27 // pred_check_branch
          %292 = sbr.rel (%p290) target = $region40
        $region39: #{tpu_custom_call.1} parent=27 // pred_region
          %s293 = smul.u32 2, %s25
          %295 = vsyncadd %s286, 0
          %s296 = smul.addr %s24, 2
          %s297 = sadd.s32 %s293, %s296
          %s298 = smul.addr %s297, 8
          %s299 = scalar_lea.hbm %s2, %s298
          %s301 = sshll.u32 %s289, 4
          %s302 = int_to_ptr.vmem [resolvable:$true] %s301
          %s303 = sshll.u32 %s299, 4
          %s304 = int_to_ptr.hbm [resolvable:$true] %s303
          %306 = dma.vmem_to_hbm [thread:$0]  %s302, 256, %s304, %s286
        $region40: #{tpu_custom_call.1} parent=27 // pred_fallthru
          _
      $region28: #{tpu_custom_call.1} parent=5 // pred_fallthru
        _
      %p307 = scmp.le.s32.totalorder 2, %s15
      // Predicated region
      $region41: #{tpu_custom_call.1} parent=5 // pred_check
        %p308 = pneg %p307
      $region42: #{tpu_custom_call.1} parent=5 // pred_check_branch
        %310 = sbr.rel (%p308) target = $region44
      $region43: #{tpu_custom_call.1} parent=5 // pred_region
        %s311 = ssub.s32 %s15, 2
        // Predicated region
        $region45: #{tpu_custom_call.1} parent=43 // pred_check
          %p312 = pneg %p105
        $region46: #{tpu_custom_call.1} parent=43 // pred_check_branch
          %314 = sbr.rel (%p312) target = $region48
        $region47: #{tpu_custom_call.1} parent=43 // pred_region
          %s315 = sand.u32 %s90, 1
          %s316 = scalar_lea.sflag [#allocation4], %s315
          %s317 = sand.u32 %s90, 1
          %s318 = smul.addr %s317, 16
          %s319 = scalar_lea.vmem [#allocation7], %s318
          %321 = dma.done %s316, 256
        $region48: #{tpu_custom_call.1} parent=43 // pred_fallthru
          _
      $region44: #{tpu_custom_call.1} parent=5 // pred_fallthru
        _
    $region6: #{tpu_custom_call.1} parent=1 // loop_footer
      %s19 = sadd.s32 1, %s15
    $region7: #{tpu_custom_call.1} parent=1 // loop_footer_branch
      %14 = sbr.rel target = $region3
    $region8: #{tpu_custom_call.1} parent=1 // loop_exit
      _
    %322 = vsyncpa [#allocation3], 1
    %s323 = scalar_lea.sflag [#allocation3], 1
    %324 = vsyncpa %s323, 1
    %325 = vsyncpa [#allocation6], 1
    %326 = vsyncpa [#allocation4], 1
    %s327 = scalar_lea.sflag [#allocation4], 1
    %328 = vsyncpa %s327, 1

</llo_original>
